<compile_context>
chip_gen: v7x
topology: tpu7x:2x2x1
jax: 0.10.0
libtpu: 0.0.40
codegen_flags: <defaults>
</compile_context>

<pallas_src>
import jax
import jax.numpy as jnp
from jax.experimental import pallas as pl
from jax.experimental.pallas import tpu as pltpu

BN_EPS = 1e-5


def _make_fused_unet_block_kernel(layer_dims, n_batch, bn_eps):
    """Builds the fused (conv -> BN(batch stats) -> ReLU) x depth kernel.

    layer_dims: tuple of (h_in, w_in, c_in, kh_sz, h_out, w_out, c_out) per layer.
    Kernel refs (in order):
      x_ref : (N*H0, W0*C0)                        bf16   stacked input slab
      per layer l:
        a_ref: (KH*W_in*C_in, W_out*C_out)         bf16   KH-folded banded conv weights
        g_ref: (1, W_out*C_out)                    f32    gamma tiled over W_out
        b_ref: (1, W_out*C_out)                    f32    beta  tiled over W_out
        p_ref: (W_out*C_out, W_out*C_out)          f32    channel reduce/broadcast matrix
      o_ref : (N*H_last, W_last*C_last)            f32    stacked output slab
    """
    depth = len(layer_dims)

    def kernel(*refs):
        x_ref = refs[0]
        o_ref = refs[-1]
        layer_refs = refs[1:-1]

        # Stacked activations: rows = N*H (batch folded into M), lanes = W*C, bf16.
        act = x_ref[...]

        for li, (h_in, w_in, c_in, kh_sz, h_out, w_out, c_out) in enumerate(layer_dims):
            a_ref, g_ref, b_ref, p_ref = layer_refs[4 * li:4 * li + 4]
            lanes = w_out * c_out

            # ---- Conv: ONE bf16 MXU matmul for the whole layer, f32 accumulation.
            # For each image, lane-concat the KH vertical-tap shifted row windows of the
            # bf16 slab (static slices on the bf16 LHS), then stack images along M.
            imgs = []
            for nb in range(n_batch):
                base = nb * h_in
                taps = [act[base + kh: base + kh + h_out, :] for kh in range(kh_sz)]
                imgs.append(jnp.concatenate(taps, axis=1))      # (h_out, KH*w_in*c_in)
            lhs = jnp.concatenate(imgs, axis=0)                  # (N*h_out, KH*w_in*c_in)
            y = jnp.dot(lhs, a_ref[...],
                        preferred_element_type=jnp.float32)      # (N*h_out, lanes) f32

            # ---- BatchNorm2d (training mode): biased batch stats per output channel over
            # (N, H_out, W_out), all in f32.  The two per-lane stats are stacked into one
            # (2, lanes) LHS; P reduces over the W_out positions of each channel and
            # broadcasts the result back to every lane in a single small matmul.
            lane_sum = jnp.sum(y, axis=0, keepdims=True)
            lane_sqs = jnp.sum(y * y, axis=0, keepdims=True)
            stats = jnp.concatenate([lane_sum, lane_sqs], axis=0)          # (2, lanes)
            count = float(n_batch * h_out * w_out)
            red = jnp.dot(stats, p_ref[...],
                          preferred_element_type=jnp.float32) * (1.0 / count)
            mean, ex2 = red[0:1, :], red[1:2, :]
            var = jnp.maximum(ex2 - mean * mean, 0.0)
            scale = jax.lax.rsqrt(var + bn_eps) * g_ref[...]               # (1, lanes)
            shift = b_ref[...] - mean * scale                              # (1, lanes)

            # ---- Normalize + ReLU (scale/shift broadcast once over the whole slab).
            y = jnp.maximum(y * scale + shift, 0.0)
            if li + 1 < depth:
                act = y.astype(jnp.bfloat16)          # stays resident in VMEM/vregs
            else:
                o_ref[...] = y.astype(o_ref.dtype)

    return kernel


def _banded_conv_weights(w_oihw, w_in, w_out):
    """(C_out, C_in, KH, KW) -> A of shape (KH*w_in*C_in, w_out*C_out) with
    A[kh*w_in*C_in + w*C_in + ci, wo*C_out + co] = W[co, ci, kh, w - wo] inside the KW
    band, else 0, so that the KH-folded shifted-window LHS @ A reproduces Conv2d exactly."""
    c_out, c_in, kh_sz, kw_sz = w_oihw.shape
    w_t = jnp.transpose(w_oihw, (2, 3, 1, 0))  # (KH, KW, C_in, C_out)
    a = jnp.zeros((kh_sz, w_in, c_in, w_out, c_out), jnp.float32)
    eye = jnp.eye(w_out, dtype=jnp.float32)
    for kw in range(kw_sz):
        band = jnp.zeros((w_in, w_out), jnp.float32).at[kw:kw + w_out, :].set(eye)
        a = a + band[None, :, None, :, None] * w_t[:, kw][:, None, :, None, :]
    return a.reshape(kh_sz * w_in * c_in, w_out * c_out)


@jax.jit
def unet_block_forward(x_nhwc, params):
    """UnetBlock.forward: (Conv(k, valid, no bias) -> BN(batch stats) -> ReLU) x depth,
    fused into one Pallas TPU kernel call."""
    n, h, w, c = x_nhwc.shape
    layer_dims = []
    operands = []
    flops = 0
    h_in, w_in, c_in = h, w, c
    for (w_oihw, gamma, beta) in params:
        c_out, c_in_w, kh_sz, kw_sz = w_oihw.shape
        assert c_in_w == c_in, (c_in_w, c_in)
        h_out, w_out = h_in - kh_sz + 1, w_in - kw_sz + 1
        layer_dims.append((h_in, w_in, c_in, kh_sz, h_out, w_out, c_out))
        lanes = w_out * c_out

        a = _banded_conv_weights(w_oihw, w_in, w_out).astype(jnp.bfloat16)
        g_lane = jnp.tile(gamma.astype(jnp.float32).reshape(1, c_out), (1, w_out))
        b_lane = jnp.tile(beta.astype(jnp.float32).reshape(1, c_out), (1, w_out))
        p = jnp.kron(jnp.ones((w_out, w_out), jnp.float32),
                     jnp.eye(c_out, dtype=jnp.float32))
        operands += [a, g_lane, b_lane, p]

        # Actual MXU MAC count: conv matmul (including banded zeros) + BN-stat matmul.
        flops += 2 * (n * h_out) * (kh_sz * w_in * c_in) * lanes
        flops += 2 * 2 * lanes * lanes
        h_in, w_in, c_in = h_out, w_out, c_out

    # Input images as one stacked (N*H, W*C) bf16 slab (batch folded into M for the MXU).
    x2d = x_nhwc.reshape(n * h, w * c).astype(jnp.bfloat16)
    # TODO(synk): store bf16 output instead if the downstream consumer accepts it
    # (halves writeback bytes); kept f32 here to match the PyTorch module's output dtype.
    out_shape = jax.ShapeDtypeStruct((n * h_in, w_in * c_in), jnp.float32)

    bytes_accessed = x2d.size * x2d.dtype.itemsize + n * h_in * w_in * c_in * 4
    for op in operands:
        bytes_accessed += op.size * op.dtype.itemsize

    kernel = _make_fused_unet_block_kernel(tuple(layer_dims), n, BN_EPS)
    out2d = pl.pallas_call(
        kernel,
        out_shape=out_shape,
        compiler_params=pltpu.CompilerParams(vmem_limit_bytes=4 * 1024 * 1024),
        cost_estimate=pl.CostEstimate(flops=flops, transcendentals=0,
                                      bytes_accessed=bytes_accessed),
    )(x2d, *operands)
    return out2d.reshape(n, h_in, w_in, c_in)


def init_unet_block_params(key, in_channels, out_channels=None, widthf=2,
                           kernel_size=3, depth=2):
    """Deterministic parameter init matching UnetBlock.__init__ shapes."""
    out_channels = widthf * in_channels if out_channels is None else out_channels
    params = []
    cin = in_channels
    for _ in range(depth):
        key, wk = jax.random.split(key)
        fan_in = cin * kernel_size * kernel_size
        w = jax.random.uniform(
            wk, (out_channels, cin, kernel_size, kernel_size),
            minval=-1.0, maxval=1.0, dtype=jnp.float32) / jnp.sqrt(float(fan_in))
        gamma = jnp.ones((out_channels,), jnp.float32)   # BatchNorm2d default init
        beta = jnp.zeros((out_channels,), jnp.float32)
        params.append((w, gamma, beta))
        cin = out_channels
    return params


def _reference_forward(x_nhwc, params, conv_dtype=jnp.float32):
    """Pure-JAX reference (lax conv + batch-stat BN + ReLU).
    conv_dtype=jnp.bfloat16 mirrors the kernel's bf16-input / f32-accumulate matmuls."""
    y = x_nhwc
    for (w, g, b) in params:
        w_hwio = jnp.transpose(w, (2, 3, 1, 0)).astype(conv_dtype)  # (KH, KW, Cin, Cout)
        y = jax.lax.conv_general_dilated(
            y.astype(conv_dtype), w_hwio, window_strides=(1, 1), padding="VALID",
            dimension_numbers=("NHWC", "HWIO", "NHWC"),
            preferred_element_type=jnp.float32)
        mean = jnp.mean(y, axis=(0, 1, 2), keepdims=True)
        var = jnp.mean(jnp.square(y - mean), axis=(0, 1, 2), keepdims=True)
        y = (y - mean) * jax.lax.rsqrt(var + BN_EPS) * g + b
        y = jnp.maximum(y, 0.0)
    return y


if __name__ == "__main__":
    key = jax.random.PRNGKey(0)
    k_x, k_p = jax.random.split(key)

    # Small shapes consistent with the module: batch=2, in_channels=4, spatial=16.
    N, Cin, H, W = 2, 4, 16, 16
    x_nchw = jax.random.normal(k_x, (N, Cin, H, W), dtype=jnp.float32)
    x_nhwc = jnp.transpose(x_nchw, (0, 2, 3, 1))  # kernel layout: NHWC

    params = init_unet_block_params(k_p, in_channels=Cin, widthf=2,
                                    kernel_size=3, depth=2)

    out = unet_block_forward(x_nhwc, params)
    out = jax.block_until_ready(out)

    # Expected: (2, 12, 12, 8)  (two valid 3x3 convs: 16 -> 14 -> 12; channels 4 -> 8)
    assert out.shape == (N, H - 4, W - 4, 2 * Cin), out.shape

    # Tight check against a precision-matched (bf16-input conv, f32 accumulation) reference.
    ref_bf16 = _reference_forward(x_nhwc, params, conv_dtype=jnp.bfloat16)
    err_bf16 = float(jnp.max(jnp.abs(out - ref_bf16)))
    assert jnp.allclose(out, ref_bf16, atol=1e-3, rtol=1e-3), err_bf16

    # Sanity check against the exact f32 (PyTorch-precision) reference: deviation is only
    # the deliberate bf16 rounding of the matmul inputs.
    ref_f32 = _reference_forward(x_nhwc, params, conv_dtype=jnp.float32)
    err_f32 = float(jnp.max(jnp.abs(out - ref_f32)))
    assert jnp.allclose(out, ref_f32, atol=5e-2, rtol=5e-2), err_f32

    print("KERNEL_OK")
</pallas_src>

<mosaic_0001>
module attributes {stable_mosaic.version = 11 : i64} {
  func.func @kernel(%arg0: memref<32x64xbf16, #tpu.memory_space<vmem>>, %arg1: memref<192x112xbf16, #tpu.memory_space<vmem>>, %arg2: memref<1x112xf32, #tpu.memory_space<vmem>>, %arg3: memref<1x112xf32, #tpu.memory_space<vmem>>, %arg4: memref<112x112xf32, #tpu.memory_space<vmem>>, %arg5: memref<336x96xbf16, #tpu.memory_space<vmem>>, %arg6: memref<1x96xf32, #tpu.memory_space<vmem>>, %arg7: memref<1x96xf32, #tpu.memory_space<vmem>>, %arg8: memref<96x96xf32, #tpu.memory_space<vmem>>, %arg9: memref<24x96xf32, #tpu.memory_space<vmem>>) attributes {dimension_semantics = [], scalar_prefetch = 0 : i64, scratch_operands = 0 : i64, tpu.core_type = #tpu.core_type<tc>} {
    %c0 = arith.constant 0 : index
    %c0_0 = arith.constant 0 : index
    %0 = vector.load %arg0[%c0, %c0_0] : memref<32x64xbf16, #tpu.memory_space<vmem>>, vector<32x64xbf16>
    %1 = vector.extract_strided_slice %0 {offsets = [0, 0], sizes = [14, 64], strides = [1, 1]} : vector<32x64xbf16> to vector<14x64xbf16>
    %2 = vector.extract_strided_slice %0 {offsets = [1, 0], sizes = [14, 64], strides = [1, 1]} : vector<32x64xbf16> to vector<14x64xbf16>
    %3 = vector.extract_strided_slice %0 {offsets = [2, 0], sizes = [14, 64], strides = [1, 1]} : vector<32x64xbf16> to vector<14x64xbf16>
    %4 = tpu.concatenate %1, %2, %3 in 1 : vector<14x64xbf16>, vector<14x64xbf16>, vector<14x64xbf16> -> vector<14x192xbf16>
    %5 = vector.extract_strided_slice %0 {offsets = [16, 0], sizes = [14, 64], strides = [1, 1]} : vector<32x64xbf16> to vector<14x64xbf16>
    %6 = vector.extract_strided_slice %0 {offsets = [17, 0], sizes = [14, 64], strides = [1, 1]} : vector<32x64xbf16> to vector<14x64xbf16>
    %7 = vector.extract_strided_slice %0 {offsets = [18, 0], sizes = [14, 64], strides = [1, 1]} : vector<32x64xbf16> to vector<14x64xbf16>
    %8 = tpu.concatenate %5, %6, %7 in 1 : vector<14x64xbf16>, vector<14x64xbf16>, vector<14x64xbf16> -> vector<14x192xbf16>
    %9 = tpu.concatenate %4, %8 in 0 : vector<14x192xbf16>, vector<14x192xbf16> -> vector<28x192xbf16>
    %c0_1 = arith.constant 0 : index
    %c0_2 = arith.constant 0 : index
    %10 = vector.load %arg1[%c0_1, %c0_2] : memref<192x112xbf16, #tpu.memory_space<vmem>>, vector<192x112xbf16>
    %cst = arith.constant dense<0.000000e+00> : vector<28x112xf32>
    %11 = tpu.matmul %9, %10, %cst {dimension_numbers = #tpu.dot_dimension_numbers<[1], [0], [0], [1], [0, 0, 1, 1], [], []>} : vector<28x192xbf16>, vector<192x112xbf16>, vector<28x112xf32> -> vector<28x112xf32>
    %cst_3 = arith.constant dense<0.000000e+00> : vector<112xf32>
    %12 = vector.multi_reduction <add>, %11, %cst_3 [0] : vector<28x112xf32> to vector<112xf32>
    %13 = vector.shape_cast %12 : vector<112xf32> to vector<1x112xf32>
    %14 = arith.mulf %11, %11 : vector<28x112xf32>
    %cst_4 = arith.constant dense<0.000000e+00> : vector<112xf32>
    %15 = vector.multi_reduction <add>, %14, %cst_4 [0] : vector<28x112xf32> to vector<112xf32>
    %16 = vector.shape_cast %15 : vector<112xf32> to vector<1x112xf32>
    %17 = tpu.concatenate %13, %16 in 0 : vector<1x112xf32>, vector<1x112xf32> -> vector<2x112xf32>
    %c0_5 = arith.constant 0 : index
    %c0_6 = arith.constant 0 : index
    %18 = vector.load %arg4[%c0_5, %c0_6] : memref<112x112xf32, #tpu.memory_space<vmem>>, vector<112x112xf32>
    %cst_7 = arith.constant dense<0.000000e+00> : vector<2x112xf32>
    %19 = tpu.matmul %17, %18, %cst_7 {dimension_numbers = #tpu.dot_dimension_numbers<[1], [0], [0], [1], [0, 0, 1, 1], [], []>} : vector<2x112xf32>, vector<112x112xf32>, vector<2x112xf32> -> vector<2x112xf32>
    %cst_8 = arith.constant 0.00255102036 : f32
    %20 = vector.broadcast %cst_8 : f32 to vector<2x112xf32>
    %21 = arith.mulf %19, %20 : vector<2x112xf32>
    %22 = vector.extract_strided_slice %21 {offsets = [0, 0], sizes = [1, 112], strides = [1, 1]} : vector<2x112xf32> to vector<1x112xf32>
    %23 = vector.extract_strided_slice %21 {offsets = [1, 0], sizes = [1, 112], strides = [1, 1]} : vector<2x112xf32> to vector<1x112xf32>
    %24 = arith.mulf %22, %22 : vector<1x112xf32>
    %25 = arith.subf %23, %24 : vector<1x112xf32>
    %cst_9 = arith.constant 0.000000e+00 : f32
    %26 = vector.broadcast %cst_9 : f32 to vector<1x112xf32>
    %27 = arith.maximumf %25, %26 : vector<1x112xf32>
    %cst_10 = arith.constant 9.99999974E-6 : f32
    %28 = vector.broadcast %cst_10 : f32 to vector<1x112xf32>
    %29 = arith.addf %27, %28 : vector<1x112xf32>
    %30 = math.rsqrt %29 : vector<1x112xf32>
    %c0_11 = arith.constant 0 : index
    %c0_12 = arith.constant 0 : index
    %31 = vector.load %arg2[%c0_11, %c0_12] : memref<1x112xf32, #tpu.memory_space<vmem>>, vector<1x112xf32>
    %32 = arith.mulf %30, %31 : vector<1x112xf32>
    %c0_13 = arith.constant 0 : index
    %c0_14 = arith.constant 0 : index
    %33 = vector.load %arg3[%c0_13, %c0_14] : memref<1x112xf32, #tpu.memory_space<vmem>>, vector<1x112xf32>
    %34 = arith.mulf %22, %32 : vector<1x112xf32>
    %35 = arith.subf %33, %34 : vector<1x112xf32>
    %36 = vector.broadcast %32 : vector<1x112xf32> to vector<28x112xf32>
    %37 = arith.mulf %11, %36 : vector<28x112xf32>
    %38 = vector.broadcast %35 : vector<1x112xf32> to vector<28x112xf32>
    %39 = arith.addf %37, %38 : vector<28x112xf32>
    %cst_15 = arith.constant 0.000000e+00 : f32
    %40 = vector.broadcast %cst_15 : f32 to vector<28x112xf32>
    %41 = arith.maximumf %39, %40 : vector<28x112xf32>
    %42 = arith.truncf %41 : vector<28x112xf32> to vector<28x112xbf16>
    %43 = vector.extract_strided_slice %42 {offsets = [0, 0], sizes = [12, 112], strides = [1, 1]} : vector<28x112xbf16> to vector<12x112xbf16>
    %44 = vector.extract_strided_slice %42 {offsets = [1, 0], sizes = [12, 112], strides = [1, 1]} : vector<28x112xbf16> to vector<12x112xbf16>
    %45 = vector.extract_strided_slice %42 {offsets = [2, 0], sizes = [12, 112], strides = [1, 1]} : vector<28x112xbf16> to vector<12x112xbf16>
    %46 = tpu.concatenate %43, %44, %45 in 1 : vector<12x112xbf16>, vector<12x112xbf16>, vector<12x112xbf16> -> vector<12x336xbf16>
    %47 = vector.extract_strided_slice %42 {offsets = [14, 0], sizes = [12, 112], strides = [1, 1]} : vector<28x112xbf16> to vector<12x112xbf16>
    %48 = vector.extract_strided_slice %42 {offsets = [15, 0], sizes = [12, 112], strides = [1, 1]} : vector<28x112xbf16> to vector<12x112xbf16>
    %49 = vector.extract_strided_slice %42 {offsets = [16, 0], sizes = [12, 112], strides = [1, 1]} : vector<28x112xbf16> to vector<12x112xbf16>
    %50 = tpu.concatenate %47, %48, %49 in 1 : vector<12x112xbf16>, vector<12x112xbf16>, vector<12x112xbf16> -> vector<12x336xbf16>
    %51 = tpu.concatenate %46, %50 in 0 : vector<12x336xbf16>, vector<12x336xbf16> -> vector<24x336xbf16>
    %c0_16 = arith.constant 0 : index
    %c0_17 = arith.constant 0 : index
    %52 = vector.load %arg5[%c0_16, %c0_17] : memref<336x96xbf16, #tpu.memory_space<vmem>>, vector<336x96xbf16>
    %cst_18 = arith.constant dense<0.000000e+00> : vector<24x96xf32>
    %53 = tpu.matmul %51, %52, %cst_18 {dimension_numbers = #tpu.dot_dimension_numbers<[1], [0], [0], [1], [0, 0, 1, 1], [], []>} : vector<24x336xbf16>, vector<336x96xbf16>, vector<24x96xf32> -> vector<24x96xf32>
    %cst_19 = arith.constant dense<0.000000e+00> : vector<96xf32>
    %54 = vector.multi_reduction <add>, %53, %cst_19 [0] : vector<24x96xf32> to vector<96xf32>
    %55 = vector.shape_cast %54 : vector<96xf32> to vector<1x96xf32>
    %56 = arith.mulf %53, %53 : vector<24x96xf32>
    %cst_20 = arith.constant dense<0.000000e+00> : vector<96xf32>
    %57 = vector.multi_reduction <add>, %56, %cst_20 [0] : vector<24x96xf32> to vector<96xf32>
    %58 = vector.shape_cast %57 : vector<96xf32> to vector<1x96xf32>
    %59 = tpu.concatenate %55, %58 in 0 : vector<1x96xf32>, vector<1x96xf32> -> vector<2x96xf32>
    %c0_21 = arith.constant 0 : index
    %c0_22 = arith.constant 0 : index
    %60 = vector.load %arg8[%c0_21, %c0_22] : memref<96x96xf32, #tpu.memory_space<vmem>>, vector<96x96xf32>
    %cst_23 = arith.constant dense<0.000000e+00> : vector<2x96xf32>
    %61 = tpu.matmul %59, %60, %cst_23 {dimension_numbers = #tpu.dot_dimension_numbers<[1], [0], [0], [1], [0, 0, 1, 1], [], []>} : vector<2x96xf32>, vector<96x96xf32>, vector<2x96xf32> -> vector<2x96xf32>
    %cst_24 = arith.constant 0.00347222225 : f32
    %62 = vector.broadcast %cst_24 : f32 to vector<2x96xf32>
    %63 = arith.mulf %61, %62 : vector<2x96xf32>
    %64 = vector.extract_strided_slice %63 {offsets = [0, 0], sizes = [1, 96], strides = [1, 1]} : vector<2x96xf32> to vector<1x96xf32>
    %65 = vector.extract_strided_slice %63 {offsets = [1, 0], sizes = [1, 96], strides = [1, 1]} : vector<2x96xf32> to vector<1x96xf32>
    %66 = arith.mulf %64, %64 : vector<1x96xf32>
    %67 = arith.subf %65, %66 : vector<1x96xf32>
    %cst_25 = arith.constant 0.000000e+00 : f32
    %68 = vector.broadcast %cst_25 : f32 to vector<1x96xf32>
    %69 = arith.maximumf %67, %68 : vector<1x96xf32>
    %cst_26 = arith.constant 9.99999974E-6 : f32
    %70 = vector.broadcast %cst_26 : f32 to vector<1x96xf32>
    %71 = arith.addf %69, %70 : vector<1x96xf32>
    %72 = math.rsqrt %71 : vector<1x96xf32>
    %c0_27 = arith.constant 0 : index
    %c0_28 = arith.constant 0 : index
    %73 = vector.load %arg6[%c0_27, %c0_28] : memref<1x96xf32, #tpu.memory_space<vmem>>, vector<1x96xf32>
    %74 = arith.mulf %72, %73 : vector<1x96xf32>
    %c0_29 = arith.constant 0 : index
    %c0_30 = arith.constant 0 : index
    %75 = vector.load %arg7[%c0_29, %c0_30] : memref<1x96xf32, #tpu.memory_space<vmem>>, vector<1x96xf32>
    %76 = arith.mulf %64, %74 : vector<1x96xf32>
    %77 = arith.subf %75, %76 : vector<1x96xf32>
    %78 = vector.broadcast %74 : vector<1x96xf32> to vector<24x96xf32>
    %79 = arith.mulf %53, %78 : vector<24x96xf32>
    %80 = vector.broadcast %77 : vector<1x96xf32> to vector<24x96xf32>
    %81 = arith.addf %79, %80 : vector<24x96xf32>
    %cst_31 = arith.constant 0.000000e+00 : f32
    %82 = vector.broadcast %cst_31 : f32 to vector<24x96xf32>
    %83 = arith.maximumf %81, %82 : vector<24x96xf32>
    %c0_32 = arith.constant 0 : index
    %c0_33 = arith.constant 0 : index
    %84 = vector.load %arg9[%c0_32, %c0_33] : memref<24x96xf32, #tpu.memory_space<vmem>>, vector<24x96xf32>
    tpu.vector_store %arg9[%c0_32, %c0_33], %83 {strides = array<i32>} : memref<24x96xf32, #tpu.memory_space<vmem>>, vector<24x96xf32>,
    return
  }
}

</mosaic_0001>

<llo_original>
// kernel: unet_block_forward.1
$region0: #{unet_block_forward.1}
  #allocation0 [shape = 'u32[]', space=smem, size = 0x4, offset = 0x4, fixed_abs, tag = 'smem constant byte address 0x4 - core index']
  #allocation1 [shape = 'u32[144,128]{1,0:T(1,128)}', space=vmem, size = 0x12000, scoped, tag = 'internal scratch']
  %s0 = inlined_call_operand.vmem [shape: bf16[32,64], index: 0, kind: input, shape index: {}]
  %s1 = inlined_call_operand.vmem [shape: bf16[192,112], index: 1, kind: input, shape index: {}]
  %s2 = inlined_call_operand.vmem [shape: f32[1,112], index: 2, kind: input, shape index: {}]
  %s3 = inlined_call_operand.vmem [shape: f32[1,112], index: 3, kind: input, shape index: {}]
  %s4 = inlined_call_operand.vmem [shape: f32[112,112], index: 4, kind: input, shape index: {}]
  %s5 = inlined_call_operand.vmem [shape: bf16[336,96], index: 5, kind: input, shape index: {}]
  %s6 = inlined_call_operand.vmem [shape: f32[1,96], index: 6, kind: input, shape index: {}]
  %s7 = inlined_call_operand.vmem [shape: f32[1,96], index: 7, kind: input, shape index: {}]
  %s8 = inlined_call_operand.vmem [shape: f32[96,96], index: 8, kind: input, shape index: {}]
  %s9 = inlined_call_operand.vmem [shape: f32[24,96], index: 9, kind: output, shape index: {}]
  %s10 = sld [smem:[#allocation0]]
  $region46: #{unet_block_forward.1} parent=0
    _
  %s12 = ssub.s32 1, %s10
  %s13 = scalar_select 0, %s12, %s10
  // Predicated region
  $region2: #{unet_block_forward.1} parent=0 // pred_check
    _
  $region3: #{unet_block_forward.1} parent=0 // pred_check_branch
    %15 = sbr.rel (0) target = $region5
  $region4: #{unet_block_forward.1} parent=0 // pred_region
    _
  $region5: #{unet_block_forward.1} parent=0 // pred_fallthru
    _
  // Predicated region
  $region6: #{unet_block_forward.1} parent=0 // pred_check
    _
  $region7: #{unet_block_forward.1} parent=0 // pred_check_branch
    %17 = sbr.rel (0) target = $region9
  $region8: #{unet_block_forward.1} parent=0 // pred_region
    _
  $region9: #{unet_block_forward.1} parent=0 // pred_fallthru
    _
  // Predicated region
  $region10: #{unet_block_forward.1} parent=0 // pred_check
    _
  $region11: #{unet_block_forward.1} parent=0 // pred_check_branch
    %19 = sbr.rel (0) target = $region13
  $region12: #{unet_block_forward.1} parent=0 // pred_region
    _
  $region13: #{unet_block_forward.1} parent=0 // pred_fallthru
    _
  // Predicated region
  $region14: #{unet_block_forward.1} parent=0 // pred_check
    _
  $region15: #{unet_block_forward.1} parent=0 // pred_check_branch
    %21 = sbr.rel (0) target = $region17
  $region16: #{unet_block_forward.1} parent=0 // pred_region
    _
  $region17: #{unet_block_forward.1} parent=0 // pred_fallthru
    _
  // Predicated region
  $region18: #{unet_block_forward.1} parent=0 // pred_check
    _
  $region19: #{unet_block_forward.1} parent=0 // pred_check_branch
    %23 = sbr.rel (0) target = $region21
  $region20: #{unet_block_forward.1} parent=0 // pred_region
    _
  $region21: #{unet_block_forward.1} parent=0 // pred_fallthru
    _
  // Predicated region
  $region22: #{unet_block_forward.1} parent=0 // pred_check
    _
  $region23: #{unet_block_forward.1} parent=0 // pred_check_branch
    %25 = sbr.rel (0) target = $region25
  $region24: #{unet_block_forward.1} parent=0 // pred_region
    _
  $region25: #{unet_block_forward.1} parent=0 // pred_fallthru
    _
  // Predicated region
  $region26: #{unet_block_forward.1} parent=0 // pred_check
    _
  $region27: #{unet_block_forward.1} parent=0 // pred_check_branch
    %27 = sbr.rel (0) target = $region29
  $region28: #{unet_block_forward.1} parent=0 // pred_region
    _
  $region29: #{unet_block_forward.1} parent=0 // pred_fallthru
    _
  // Predicated region
  $region30: #{unet_block_forward.1} parent=0 // pred_check
    _
  $region31: #{unet_block_forward.1} parent=0 // pred_check_branch
    %29 = sbr.rel (0) target = $region33
  $region32: #{unet_block_forward.1} parent=0 // pred_region
    _
  $region33: #{unet_block_forward.1} parent=0 // pred_fallthru
    _
  // Predicated region
  $region34: #{unet_block_forward.1} parent=0 // pred_check
    _
  $region35: #{unet_block_forward.1} parent=0 // pred_check_branch
    %31 = sbr.rel (0) target = $region37
  $region36: #{unet_block_forward.1} parent=0 // pred_region
    _
  $region37: #{unet_block_forward.1} parent=0 // pred_fallthru
    _
  %v33 = vld [vmem:[%s0] sm:$0xf]
  %v34 = vld [vmem:[%s0 + $0x4] sm:$0xf]
  %v35 = vld [vmem:[%s0 + $0x8] sm:$0xf]
  %v36 = vld [vmem:[%s0 + $0xc] sm:$0xf]
  %v39 = vunpack.c.l.b16 %v33
  %v40 = vunpack.c.l.b16 %v34
  %v41 = vpack.c.b16 %v40, %v39
  %v43 = vshrl.u32 %v41, 16
  %v45 = vshll.u32 %v41, 16
  %v47 = vrot.slane %v45, 1
  %v48 = vor.u32 %v43, %v47
  %49 = vrot.lane.b32.xlu0 %v48, 64
  %v50 = vpop.permute.xlu0 %49
  %v51 = vrot.slane %v41, 1
  %vm52 = vcmask 523264
  %v54 = vsel %vm52, %v41, %v50
  %v57 = vunpack.c.l.b16 %v35
  %v58 = vunpack.c.l.b16 %v36
  %v59 = vpack.c.b16 %v58, %v57
  %v61 = vshrl.u32 %v59, 16
  %v63 = vshll.u32 %v59, 16
  %v65 = vrot.slane %v63, 1
  %v66 = vor.u32 %v61, %v65
  %67 = vrot.lane.b32.xlu0 %v66, 64
  %v68 = vpop.permute.xlu0 %67
  %v69 = vrot.slane %v59, 1
  %v71 = vsel %vm52, %v59, %v68
  %v73 = vrot.slane %v71, 1
  %v74 = vrot.slane %v69, 1
  %vm76 = vcmask 1046528
  %v78 = vsel %vm76, %v54, %v73
  %v82 = vsel %vm76, %v51, %v74
  %v83 = vld [vmem:[%s1] sm:$0xf]
  %v84 = vld [vmem:[%s1 + $0x4] sm:$0xf]
  %v85 = vld [vmem:[%s1 + $0x8] sm:$0xf]
  %v86 = vld [vmem:[%s1 + $0xc] sm:$0xf]
  %v87 = vld [vmem:[%s1 + $0x10] sm:$0xf]
  %v88 = vld [vmem:[%s1 + $0x14] sm:$0xf]
  %v89 = vld [vmem:[%s1 + $0x18] sm:$0xf]
  %v90 = vld [vmem:[%s1 + $0x1c] sm:$0xf]
  %v91 = vld [vmem:[%s1 + $0x20] sm:$0xf]
  %v92 = vld [vmem:[%s1 + $0x24] sm:$0xf]
  %v93 = vld [vmem:[%s1 + $0x28] sm:$0xf]
  %v94 = vld [vmem:[%s1 + $0x2c] sm:$0xf]
  %v95 = vld [vmem:[%s1 + $0x30] sm:$0xf]
  %v96 = vld [vmem:[%s1 + $0x34] sm:$0xf]
  %v97 = vld [vmem:[%s1 + $0x38] sm:$0xf]
  %v98 = vld [vmem:[%s1 + $0x3c] sm:$0xf]
  %v99 = vld [vmem:[%s1 + $0x40] sm:$0xf]
  %v100 = vld [vmem:[%s1 + $0x44] sm:$0xf]
  %v101 = vld [vmem:[%s1 + $0x48] sm:$0xf]
  %v102 = vld [vmem:[%s1 + $0x4c] sm:$0xf]
  %v103 = vld [vmem:[%s1 + $0x50] sm:$0xf]
  %v104 = vld [vmem:[%s1 + $0x54] sm:$0xf]
  %v105 = vld [vmem:[%s1 + $0x58] sm:$0xf]
  %v106 = vld [vmem:[%s1 + $0x5c] sm:$0xf]
  %v131 = vunpack.c.l.b16 %v83
  %v132 = vunpack.c.l.b16 %v84
  %v133 = vunpack.c.l.b16 %v85
  %v134 = vunpack.c.l.b16 %v86
  %v135 = vunpack.c.l.b16 %v87
  %v136 = vunpack.c.l.b16 %v88
  %v137 = vunpack.c.l.b16 %v89
  %v138 = vunpack.c.l.b16 %v90
  %v139 = vunpack.c.l.b16 %v91
  %v140 = vunpack.c.l.b16 %v92
  %v141 = vunpack.c.l.b16 %v93
  %v142 = vunpack.c.l.b16 %v94
  %v143 = vunpack.c.l.b16 %v95
  %v144 = vunpack.c.l.b16 %v96
  %v145 = vunpack.c.l.b16 %v97
  %v146 = vunpack.c.l.b16 %v98
  %v147 = vunpack.c.l.b16 %v99
  %v148 = vunpack.c.l.b16 %v100
  %v149 = vunpack.c.l.b16 %v101
  %v150 = vunpack.c.l.b16 %v102
  %v151 = vunpack.c.l.b16 %v103
  %v152 = vunpack.c.l.b16 %v104
  %v153 = vunpack.c.l.b16 %v105
  %v154 = vunpack.c.l.b16 %v106
  %v155 = vpack.c.b16 %v132, %v131
  %v156 = vpack.c.b16 %v134, %v133
  %v157 = vpack.c.b16 %v136, %v135
  %v158 = vpack.c.b16 %v138, %v137
  %v159 = vpack.c.b16 %v140, %v139
  %v160 = vpack.c.b16 %v142, %v141
  %v161 = vpack.c.b16 %v144, %v143
  %v162 = vpack.c.b16 %v146, %v145
  %v163 = vpack.c.b16 %v148, %v147
  %v164 = vpack.c.b16 %v150, %v149
  %v165 = vpack.c.b16 %v152, %v151
  %v166 = vpack.c.b16 %v154, %v153
  %v179 = vsel %vm52, %v82, 0
  %v181 = vsel %vm52, %v74, 0
  %183 = vmatprep.subr.bf16.mxu0 0
  %184 = vmatpush1.bf16.msra.mxu0 %v155
  %185 = vmatprep.subr.bf16.mxu0 0
  %186 = vmatpush1.bf16.msra.mxu0 %v156
  %187 = vmatprep.subr.bf16.mxu0 0
  %188 = vmatpush1.bf16.msra.mxu0 %v157
  %189 = vmatprep.subr.bf16.mxu0 0
  %190 = vmatpush1.bf16.msra.mxu0 %v158
  %191 = vmatprep.subr.bf16.mxu0 0
  %192 = vmatpush1.bf16.msra.mxu0 %v159
  %193 = vmatprep.subr.bf16.mxu0 0
  %194 = vmatpush1.bf16.msra.mxu0 %v160
  %195 = vmatprep.subr.bf16.mxu0 0
  %196 = vmatpush1.bf16.msra.mxu0 %v161
  %197 = vmatprep.subr.bf16.mxu0 0
  %198 = vmatpush1.bf16.msra.mxu0 %v162
  %199 = vmatprep.subr.bf16.mxu0 0
  %200 = vmatpush1.bf16.msra.mxu0 %v163
  %201 = vmatprep.subr.bf16.mxu0 0
  %202 = vmatpush1.bf16.msra.mxu0 %v164
  %203 = vmatprep.subr.bf16.mxu0 0
  %204 = vmatpush1.bf16.msra.mxu0 %v165
  %205 = vmatprep.subr.bf16.mxu0 0
  %206 = vmatpush1.bf16.msra.mxu0 %v166
  %207 = vmatprep.subr.bf16.mxu0 0
  %208 = vmatpush1.bf16.msra.mxu0 0
  %209 = vmatprep.subr.bf16.mxu0 0
  %210 = vmatpush1.bf16.msra.mxu0 0
  %211 = vmatprep.subr.bf16.mxu0 0
  %212 = vmatpush1.bf16.msra.mxu0 0
  %213 = vmatprep.subr.bf16.mxu0 0
  %214 = vmatpush1.bf16.msra.mxu0 0
  %215 = vmatprep.mubr.bf16.mxu0 %v179
  %216 = vmatmul.mubr.bf16.gmra.mrb[0].mxu0 %v78
  %v217 = vpop.f32.mrb[0].mxu0
  %v218 = vadd.f32 0.0, %v217
  %v219 = vpop.f32.mrb[0].mxu0
  %v220 = vpop.f32.mrb[0].mxu0
  %v221 = vadd.f32 0.0, %v220
  %v222 = vpop.f32.mrb[0].mxu0
  %223 = vmatprep.mubr.bf16.mxu0 %v181
  %224 = vmatmul.mubr.bf16.gmra.mrb[0].mxu0 %v73
  %v225 = vpop.f32.mrb[0].mxu0
  %v226 = vadd.f32 0.0, %v225
  %v227 = vpop.f32.mrb[0].mxu0
  %v228 = vpop.f32.mrb[0].mxu0
  %v229 = vadd.f32 0.0, %v228
  %v230 = vpop.f32.mrb[0].mxu0
  %231 = vdwg.mxu0
  %vm232 = vcmask 916480
  %v233 = vsel %vm232, %v218, 0.0
  %v234 = vsel %vm232, %v221, 0.0
  %v235 = vadd.f32 %v233, %v234
  %v236 = vsel %vm232, %v226, 0.0
  %v237 = vadd.f32 %v235, %v236
  %vm238 = vcmask 912384
  %v239 = vsel %vm238, %v229, 0.0
  %v240 = vadd.f32 %v237, %v239
  %v241 = vrot.slane %v240, 4
  %v242 = vadd.f32 %v240, %v241
  %v243 = vrot.slane %v242, 2
  %v244 = vadd.f32 %v242, %v243
  %v245 = vrot.slane %v244, 1
  %v246 = vadd.f32 %v244, %v245
  %v247 = vmul.f32 %v218, %v218
  %v248 = vmul.f32 %v221, %v221
  %v249 = vmul.f32 %v226, %v226
  %v250 = vmul.f32 %v229, %v229
  %v251 = vsel %vm232, %v247, 0.0
  %v252 = vsel %vm232, %v248, 0.0
  %v253 = vadd.f32 %v251, %v252
  %v254 = vsel %vm232, %v249, 0.0
  %v255 = vadd.f32 %v253, %v254
  %v256 = vsel %vm238, %v250, 0.0
  %v257 = vadd.f32 %v255, %v256
  %v258 = vrot.slane %v257, 4
  %v259 = vadd.f32 %v257, %v258
  %v260 = vrot.slane %v259, 2
  %v261 = vadd.f32 %v259, %v260
  %v262 = vrot.slane %v261, 1
  %v263 = vadd.f32 %v261, %v262
  %vm264 = vcmask 1040384
  %v265 = vsel %vm264, %v246, %v263
  %v266 = vld [vmem:[%s4] sm:$0xff]
  %v267 = vld [vmem:[%s4 + $0x8] sm:$0xff]
  %v268 = vld [vmem:[%s4 + $0x10] sm:$0xff]
  %v269 = vld [vmem:[%s4 + $0x18] sm:$0xff]
  %v270 = vld [vmem:[%s4 + $0x20] sm:$0xff]
  %v271 = vld [vmem:[%s4 + $0x28] sm:$0xff]
  %v272 = vld [vmem:[%s4 + $0x30] sm:$0xff]
  %v273 = vld [vmem:[%s4 + $0x38] sm:$0xff]
  %v274 = vld [vmem:[%s4 + $0x40] sm:$0xff]
  %v275 = vld [vmem:[%s4 + $0x48] sm:$0xff]
  %v276 = vld [vmem:[%s4 + $0x50] sm:$0xff]
  %v277 = vld [vmem:[%s4 + $0x58] sm:$0xff]
  %v278 = vld [vmem:[%s4 + $0x60] sm:$0xff]
  %v279 = vld [vmem:[%s4 + $0x68] sm:$0xff]
  %v281 = vsel %vm232, %v265, 0
  %283 = vmatprep.subr.mxu0 0.0
  %284 = vmatpush1.msra.mxu0 %v266
  %285 = vmatprep.subr.mxu0 0.0
  %286 = vmatpush1.msra.mxu0 %v267
  %287 = vmatprep.subr.mxu0 0.0
  %288 = vmatpush1.msra.mxu0 %v268
  %289 = vmatprep.subr.mxu0 0.0
  %290 = vmatpush1.msra.mxu0 %v269
  %291 = vmatprep.subr.mxu0 0.0
  %292 = vmatpush1.msra.mxu0 %v270
  %293 = vmatprep.subr.mxu0 0.0
  %294 = vmatpush1.msra.mxu0 %v271
  %295 = vmatprep.subr.mxu0 0.0
  %296 = vmatpush1.msra.mxu0 %v272
  %297 = vmatprep.subr.mxu0 0.0
  %298 = vmatpush1.msra.mxu0 %v273
  %299 = vmatprep.subr.mxu0 0.0
  %300 = vmatpush1.msra.mxu0 %v274
  %301 = vmatprep.subr.mxu0 0.0
  %302 = vmatpush1.msra.mxu0 %v275
  %303 = vmatprep.subr.mxu0 0.0
  %304 = vmatpush1.msra.mxu0 %v276
  %305 = vmatprep.subr.mxu0 0.0
  %306 = vmatpush1.msra.mxu0 %v277
  %307 = vmatprep.subr.mxu0 0.0
  %308 = vmatpush1.msra.mxu0 %v278
  %309 = vmatprep.subr.mxu0 0.0
  %310 = vmatpush1.msra.mxu0 %v279
  %311 = vmatprep.subr.mxu0 0.0
  %312 = vmatpush1.msra.mxu0 0.0
  %313 = vmatprep.subr.mxu0 0.0
  %314 = vmatpush1.msra.mxu0 0.0
  %315 = vmatprep.subr.mxu0 0.0
  %316 = vmatpush1.msra.mxu0 0.0
  %317 = vmatprep.subr.mxu0 0.0
  %318 = vmatpush1.msra.mxu0 0.0
  %319 = vmatprep.subr.mxu0 0.0
  %320 = vmatpush1.msra.mxu0 0.0
  %321 = vmatprep.subr.mxu0 0.0
  %322 = vmatpush1.msra.mxu0 0.0
  %323 = vmatprep.subr.mxu0 0.0
  %324 = vmatpush1.msra.mxu0 0.0
  %325 = vmatprep.subr.mxu0 0.0
  %326 = vmatpush1.msra.mxu0 0.0
  %327 = vmatprep.subr.mxu0 0.0
  %328 = vmatpush1.msra.mxu0 0.0
  %329 = vmatprep.subr.mxu0 0.0
  %330 = vmatpush1.msra.mxu0 0.0
  %331 = vmatprep.subr.mxu0 0.0
  %332 = vmatpush1.msra.mxu0 0.0
  %333 = vmatprep.subr.mxu0 0.0
  %334 = vmatpush1.msra.mxu0 0.0
  %335 = vmatprep.subr.mxu0 0.0
  %336 = vmatpush1.msra.mxu0 0.0
  %337 = vmatprep.subr.mxu0 0.0
  %338 = vmatpush1.msra.mxu0 0.0
  %339 = vmatprep.subr.mxu0 0.0
  %340 = vmatpush1.msra.mxu0 0.0
  %341 = vmatprep.subr.mxu0 0.0
  %342 = vmatpush1.msra.mxu0 0.0
  %343 = vmatprep.subr.mxu0 0.0
  %344 = vmatpush1.msra.mxu0 0.0
  %345 = vmatprep.subr.mxu0 0.0
  %346 = vmatpush1.msra.mxu0 0.0
  %347 = vmatprep.mubr.f32.mxu0 0.0
  %348 = vmatmul.mubr.f32.gmra.mrb[0].mxu0 %v281
  %v349 = vpop.f32.mrb[0].mxu0
  %v350 = vadd.f32 0.0, %v349
  %v351 = vpop.f32.mrb[0].mxu0
  %352 = vdwg.mxu0
  %v353 = vmul.f32 %v350, 0.0025510204
  %v354 = vmul.f32 %v353, %v353
  %v356 = vrot.slane %v354, 7
  %v358 = vsub.f32 %v353, %v356
  %v359 = vmax.f32 %v358, 0.0
  %v360 = vadd.f32 %v359, 1e-05
  %v361 = vrsqrt.pop %v360
  %v362 = vld [vmem:[%s2] sm:$0x1]
  %v364 = vlaneseq
  %v365 = vshrl.u32 %v364, 7
  %v366 = vsub.s32 0, %v365
  %v367 = vrot.slane %v362, %v366
  %v369 = vmul.f32 %v361, %v367
  %v370 = vld [vmem:[%s3] sm:$0x1]
  %v372 = vrot.slane %v369, 1
  %v374 = vmul.f32 %v353, %v372
  %v375 = vsub.f32 %v370, %v374
  %v376 = vlaneseq
  %v377 = vshrl.u32 %v376, 7
  %v378 = vsub.s32 1, %v377
  %v379 = vrot.slane %v369, %v378
  %v380 = vmul.f32 %v218, %v379
  %v381 = vmul.f32 %v221, %v379
  %v382 = vmul.f32 %v226, %v379
  %v383 = vmul.f32 %v229, %v379
  %v385 = vlaneseq
  %v386 = vshrl.u32 %v385, 7
  %v387 = vsub.s32 0, %v386
  %v388 = vrot.slane %v375, %v387
  %v390 = vadd.f32 %v380, %v388
  %v391 = vadd.f32 %v381, %v388
  %v392 = vadd.f32 %v382, %v388
  %v393 = vadd.f32 %v383, %v388
  %v394 = vmax.f32 %v390, 0.0
  %v395 = vmax.f32 %v391, 0.0
  %v396 = vmax.f32 %v392, 0.0
  %v397 = vmax.f32 %v393, 0.0
  %v398 = vpack.c.bf16 %v395, %v394
  %v399 = vpack.c.bf16 %v397, %v396
  %v401 = vshrl.u32 %v398, 16
  %v403 = vshll.u32 %v398, 16
  %v405 = vrot.slane %v403, 1
  %v406 = vor.u32 %v401, %v405
  %407 = vrot.lane.b32.xlu0 %v406, 112
  %v408 = vpop.permute.xlu0 %407
  %v410 = vrot.slane %v398, 1
  %411 = vrot.lane.b32.xlu0 %v410, 96
  %v412 = vpop.permute.xlu0 %411
  %v414 = vsel %vm232, %v398, %v408
  %vm415 = vcmask 785408
  %v417 = vsel %vm415, %v408, %v412
  %vm418 = vsmask.f32 7424
  %v420 = vshll.u32 %v399, 16
  %v422 = vrot.slane %v420, 1
  %v423 = vsel %vm418, %v401, %v422
  %v424 = vshrl.u32 %v399, 16
  %v426 = vor.u32 %v424, %v422
  %427 = vrot.lane.b32.xlu0 %v423, 112
  %v428 = vpop.permute.xlu0 %427
  %429 = vrot.lane.b32.xlu0 %v426, 112
  %v430 = vpop.permute.xlu0 %429
  %v432 = vrot.slane %v399, 1
  %433 = vrot.lane.b32.xlu0 %v432, 96
  %v434 = vpop.permute.xlu0 %433
  %v436 = vsel %vm232, %v398, %v428
  %v438 = vsel %vm232, %v399, %v430
  %v440 = vsel %vm415, %v428, %v434
  %v441 = vsel %vm415, %v430, %v434
  %vm446 = vcmask 1046528
  %v447 = vrot.slane %v436, 1
  %v448 = vrot.slane %v438, 1
  %v449 = vsel %vm446, %v447, %v448
  %v450 = vrot.slane %v440, 1
  %v451 = vrot.slane %v441, 1
  %v452 = vsel %vm446, %v450, %v451
  %v453 = vrot.slane %v434, 1
  %v454 = vsel %vm446, %v453, %v453
  %vm457 = vcmask 1045504
  %v459 = vsel %vm457, %v414, %v449
  %v462 = vsel %vm457, %v417, %v452
  %v465 = vsel %vm457, %v412, %v454
  %v466 = vld [vmem:[%s5] sm:$0xf]
  %v467 = vld [vmem:[%s5 + $0x4] sm:$0xf]
  %v468 = vld [vmem:[%s5 + $0x8] sm:$0xf]
  %v469 = vld [vmem:[%s5 + $0xc] sm:$0xf]
  %v470 = vld [vmem:[%s5 + $0x10] sm:$0xf]
  %v471 = vld [vmem:[%s5 + $0x14] sm:$0xf]
  %v472 = vld [vmem:[%s5 + $0x18] sm:$0xf]
  %v473 = vld [vmem:[%s5 + $0x1c] sm:$0xf]
  %v474 = vld [vmem:[%s5 + $0x20] sm:$0xf]
  %v475 = vld [vmem:[%s5 + $0x24] sm:$0xf]
  %v476 = vld [vmem:[%s5 + $0x28] sm:$0xf]
  %v477 = vld [vmem:[%s5 + $0x2c] sm:$0xf]
  %v478 = vld [vmem:[%s5 + $0x30] sm:$0xf]
  %v479 = vld [vmem:[%s5 + $0x34] sm:$0xf]
  %v480 = vld [vmem:[%s5 + $0x38] sm:$0xf]
  %v481 = vld [vmem:[%s5 + $0x3c] sm:$0xf]
  %v482 = vld [vmem:[%s5 + $0x40] sm:$0xf]
  %v483 = vld [vmem:[%s5 + $0x44] sm:$0xf]
  %v484 = vld [vmem:[%s5 + $0x48] sm:$0xf]
  %v485 = vld [vmem:[%s5 + $0x4c] sm:$0xf]
  %v486 = vld [vmem:[%s5 + $0x50] sm:$0xf]
  %v487 = vld [vmem:[%s5 + $0x54] sm:$0xf]
  %v488 = vld [vmem:[%s5 + $0x58] sm:$0xf]
  %v489 = vld [vmem:[%s5 + $0x5c] sm:$0xf]
  %v490 = vld [vmem:[%s5 + $0x60] sm:$0xf]
  %v491 = vld [vmem:[%s5 + $0x64] sm:$0xf]
  %v492 = vld [vmem:[%s5 + $0x68] sm:$0xf]
  %v493 = vld [vmem:[%s5 + $0x6c] sm:$0xf]
  %v494 = vld [vmem:[%s5 + $0x70] sm:$0xf]
  %v495 = vld [vmem:[%s5 + $0x74] sm:$0xf]
  %v496 = vld [vmem:[%s5 + $0x78] sm:$0xf]
  %v497 = vld [vmem:[%s5 + $0x7c] sm:$0xf]
  %v498 = vld [vmem:[%s5 + $0x80] sm:$0xf]
  %v499 = vld [vmem:[%s5 + $0x84] sm:$0xf]
  %v500 = vld [vmem:[%s5 + $0x88] sm:$0xf]
  %v501 = vld [vmem:[%s5 + $0x8c] sm:$0xf]
  %v502 = vld [vmem:[%s5 + $0x90] sm:$0xf]
  %v503 = vld [vmem:[%s5 + $0x94] sm:$0xf]
  %v504 = vld [vmem:[%s5 + $0x98] sm:$0xf]
  %v505 = vld [vmem:[%s5 + $0x9c] sm:$0xf]
  %v506 = vld [vmem:[%s5 + $0xa0] sm:$0xf]
  %v507 = vld [vmem:[%s5 + $0xa4] sm:$0xf]
  %v550 = vunpack.c.l.b16 %v466
  %v551 = vunpack.c.l.b16 %v467
  %v552 = vunpack.c.l.b16 %v468
  %v553 = vunpack.c.l.b16 %v469
  %v554 = vunpack.c.l.b16 %v470
  %v555 = vunpack.c.l.b16 %v471
  %v556 = vunpack.c.l.b16 %v472
  %v557 = vunpack.c.l.b16 %v473
  %v558 = vunpack.c.l.b16 %v474
  %v559 = vunpack.c.l.b16 %v475
  %v560 = vunpack.c.l.b16 %v476
  %v561 = vunpack.c.l.b16 %v477
  %v562 = vunpack.c.l.b16 %v478
  %v563 = vunpack.c.l.b16 %v479
  %v564 = vunpack.c.l.b16 %v480
  %v565 = vunpack.c.l.b16 %v481
  %v566 = vunpack.c.l.b16 %v482
  %v567 = vunpack.c.l.b16 %v483
  %v568 = vunpack.c.l.b16 %v484
  %v569 = vunpack.c.l.b16 %v485
  %v570 = vunpack.c.l.b16 %v486
  %v571 = vunpack.c.l.b16 %v487
  %v572 = vunpack.c.l.b16 %v488
  %v573 = vunpack.c.l.b16 %v489
  %v574 = vunpack.c.l.b16 %v490
  %v575 = vunpack.c.l.b16 %v491
  %v576 = vunpack.c.l.b16 %v492
  %v577 = vunpack.c.l.b16 %v493
  %v578 = vunpack.c.l.b16 %v494
  %v579 = vunpack.c.l.b16 %v495
  %v580 = vunpack.c.l.b16 %v496
  %v581 = vunpack.c.l.b16 %v497
  %v582 = vunpack.c.l.b16 %v498
  %v583 = vunpack.c.l.b16 %v499
  %v584 = vunpack.c.l.b16 %v500
  %v585 = vunpack.c.l.b16 %v501
  %v586 = vunpack.c.l.b16 %v502
  %v587 = vunpack.c.l.b16 %v503
  %v588 = vunpack.c.l.b16 %v504
  %v589 = vunpack.c.l.b16 %v505
  %v590 = vunpack.c.l.b16 %v506
  %v591 = vunpack.c.l.b16 %v507
  %v592 = vpack.c.b16 %v551, %v550
  %v593 = vpack.c.b16 %v553, %v552
  %v594 = vpack.c.b16 %v555, %v554
  %v595 = vpack.c.b16 %v557, %v556
  %v596 = vpack.c.b16 %v559, %v558
  %v597 = vpack.c.b16 %v561, %v560
  %v598 = vpack.c.b16 %v563, %v562
  %v599 = vpack.c.b16 %v565, %v564
  %v600 = vpack.c.b16 %v567, %v566
  %v601 = vpack.c.b16 %v569, %v568
  %v602 = vpack.c.b16 %v571, %v570
  %v603 = vpack.c.b16 %v573, %v572
  %v604 = vpack.c.b16 %v575, %v574
  %v605 = vpack.c.b16 %v577, %v576
  %v606 = vpack.c.b16 %v579, %v578
  %v607 = vpack.c.b16 %v581, %v580
  %v608 = vpack.c.b16 %v583, %v582
  %v609 = vpack.c.b16 %v585, %v584
  %v610 = vpack.c.b16 %v587, %v586
  %v611 = vpack.c.b16 %v589, %v588
  %v612 = vpack.c.b16 %v591, %v590
  %vm634 = vcmask 654336
  %v635 = vsel %vm634, %v465, 0
  %v638 = vsel %vm634, %v453, 0
  %640 = vmatprep.subr.bf16.mxu0 0
  %641 = vmatpush1.bf16.msra.mxu0 %v592
  %642 = vmatprep.subr.bf16.mxu0 0
  %643 = vmatpush1.bf16.msra.mxu0 %v593
  %644 = vmatprep.subr.bf16.mxu0 0
  %645 = vmatpush1.bf16.msra.mxu0 %v594
  %646 = vmatprep.subr.bf16.mxu0 0
  %647 = vmatpush1.bf16.msra.mxu0 %v595
  %648 = vmatprep.subr.bf16.mxu0 0
  %649 = vmatpush1.bf16.msra.mxu0 %v596
  %650 = vmatprep.subr.bf16.mxu0 0
  %651 = vmatpush1.bf16.msra.mxu0 %v597
  %652 = vmatprep.subr.bf16.mxu0 0
  %653 = vmatpush1.bf16.msra.mxu0 %v598
  %654 = vmatprep.subr.bf16.mxu0 0
  %655 = vmatpush1.bf16.msra.mxu0 %v599
  %656 = vmatprep.subr.bf16.mxu0 0
  %657 = vmatpush1.bf16.msra.mxu0 %v600
  %658 = vmatprep.subr.bf16.mxu0 0
  %659 = vmatpush1.bf16.msra.mxu0 %v601
  %660 = vmatprep.subr.bf16.mxu0 0
  %661 = vmatpush1.bf16.msra.mxu0 %v602
  %662 = vmatprep.subr.bf16.mxu0 0
  %663 = vmatpush1.bf16.msra.mxu0 %v603
  %664 = vmatprep.subr.bf16.mxu0 0
  %665 = vmatpush1.bf16.msra.mxu0 %v604
  %666 = vmatprep.subr.bf16.mxu0 0
  %667 = vmatpush1.bf16.msra.mxu0 %v605
  %668 = vmatprep.subr.bf16.mxu0 0
  %669 = vmatpush1.bf16.msra.mxu0 %v606
  %670 = vmatprep.subr.bf16.mxu0 0
  %671 = vmatpush1.bf16.msra.mxu0 %v607
  %672 = vmatprep.mubr.bf16.mxu0 %v462
  %673 = vmatmul.mubr.bf16.gmra.mrb[0].mxu0 %v459
  %v674 = vpop.f32.mrb[0].mxu0
  %v675 = vadd.f32 0.0, %v674
  %v676 = vpop.f32.mrb[0].mxu0
  %v677 = vpop.f32.mrb[0].mxu0
  %v678 = vadd.f32 0.0, %v677
  %v679 = vpop.f32.mrb[0].mxu0
  %680 = vmatprep.mubr.bf16.mxu0 %v451
  %681 = vmatmul.mubr.bf16.gmra.mrb[0].mxu0 %v448
  %v682 = vpop.f32.mrb[0].mxu0
  %v683 = vadd.f32 0.0, %v682
  %v684 = vpop.f32.mrb[0].mxu0
  %v685 = vpop.f32.mrb[0].mxu0
  %v686 = vpop.f32.mrb[0].mxu0
  %687 = vdwg.mxu0
  %688 = vmatprep.subr.bf16.mxu0 0
  %689 = vmatpush1.bf16.msra.mxu0 %v608
  %690 = vmatprep.subr.bf16.mxu0 0
  %691 = vmatpush1.bf16.msra.mxu0 %v609
  %692 = vmatprep.subr.bf16.mxu0 0
  %693 = vmatpush1.bf16.msra.mxu0 %v610
  %694 = vmatprep.subr.bf16.mxu0 0
  %695 = vmatpush1.bf16.msra.mxu0 %v611
  %696 = vmatprep.subr.bf16.mxu0 0
  %697 = vmatpush1.bf16.msra.mxu0 %v612
  %698 = vmatprep.subr.bf16.mxu0 0
  %699 = vmatpush1.bf16.msra.mxu0 0
  %700 = vmatprep.subr.bf16.mxu0 0
  %701 = vmatpush1.bf16.msra.mxu0 0
  %702 = vmatprep.subr.bf16.mxu0 0
  %703 = vmatpush1.bf16.msra.mxu0 0
  %704 = vmatprep.subr.bf16.mxu0 0
  %705 = vmatpush1.bf16.msra.mxu0 0
  %706 = vmatprep.subr.bf16.mxu0 0
  %707 = vmatpush1.bf16.msra.mxu0 0
  %708 = vmatprep.subr.bf16.mxu0 0
  %709 = vmatpush1.bf16.msra.mxu0 0
  %710 = vmatprep.subr.bf16.mxu0 0
  %711 = vmatpush1.bf16.msra.mxu0 0
  %712 = vmatprep.subr.bf16.mxu0 0
  %713 = vmatpush1.bf16.msra.mxu0 0
  %714 = vmatprep.subr.bf16.mxu0 0
  %715 = vmatpush1.bf16.msra.mxu0 0
  %716 = vmatprep.subr.bf16.mxu0 0
  %717 = vmatpush1.bf16.msra.mxu0 0
  %718 = vmatprep.subr.bf16.mxu0 0
  %719 = vmatpush1.bf16.msra.mxu0 0
  %720 = vmatprep.mubr.bf16.mxu0 0
  %721 = vmatmul.mubr.bf16.gmra.mrb[0].mxu0 %v635
  %v722 = vpop.f32.mrb[0].mxu0
  %v723 = vadd.f32 %v675, %v722
  %v724 = vpop.f32.mrb[0].mxu0
  %v725 = vpop.f32.mrb[0].mxu0
  %v726 = vadd.f32 %v678, %v725
  %v727 = vpop.f32.mrb[0].mxu0
  %728 = vmatprep.mubr.bf16.mxu0 0
  %729 = vmatmul.mubr.bf16.gmra.mrb[0].mxu0 %v638
  %v730 = vpop.f32.mrb[0].mxu0
  %v731 = vadd.f32 %v683, %v730
  %v732 = vpop.f32.mrb[0].mxu0
  %v733 = vpop.f32.mrb[0].mxu0
  %v734 = vpop.f32.mrb[0].mxu0
  %735 = vdwg.mxu0
  %v736 = vsel %vm415, %v723, 0.0
  %v737 = vsel %vm415, %v726, 0.0
  %v738 = vadd.f32 %v736, %v737
  %v739 = vsel %vm415, %v731, 0.0
  %v740 = vadd.f32 %v738, %v739
  %v741 = vrot.slane %v740, 4
  %v742 = vadd.f32 %v740, %v741
  %v743 = vrot.slane %v742, 2
  %v744 = vadd.f32 %v742, %v743
  %v745 = vrot.slane %v744, 1
  %v746 = vadd.f32 %v744, %v745
  %v747 = vmul.f32 %v723, %v723
  %v748 = vmul.f32 %v726, %v726
  %v749 = vmul.f32 %v731, %v731
  %v750 = vsel %vm415, %v747, 0.0
  %v751 = vsel %vm415, %v748, 0.0
  %v752 = vadd.f32 %v750, %v751
  %v753 = vsel %vm415, %v749, 0.0
  %v754 = vadd.f32 %v752, %v753
  %v755 = vrot.slane %v754, 4
  %v756 = vadd.f32 %v754, %v755
  %v757 = vrot.slane %v756, 2
  %v758 = vadd.f32 %v756, %v757
  %v759 = vrot.slane %v758, 1
  %v760 = vadd.f32 %v758, %v759
  %v761 = vsel %vm264, %v746, %v760
  %v762 = vld [vmem:[%s8] sm:$0xff]
  %v763 = vld [vmem:[%s8 + $0x8] sm:$0xff]
  %v764 = vld [vmem:[%s8 + $0x10] sm:$0xff]
  %v765 = vld [vmem:[%s8 + $0x18] sm:$0xff]
  %v766 = vld [vmem:[%s8 + $0x20] sm:$0xff]
  %v767 = vld [vmem:[%s8 + $0x28] sm:$0xff]
  %v768 = vld [vmem:[%s8 + $0x30] sm:$0xff]
  %v769 = vld [vmem:[%s8 + $0x38] sm:$0xff]
  %v770 = vld [vmem:[%s8 + $0x40] sm:$0xff]
  %v771 = vld [vmem:[%s8 + $0x48] sm:$0xff]
  %v772 = vld [vmem:[%s8 + $0x50] sm:$0xff]
  %v773 = vld [vmem:[%s8 + $0x58] sm:$0xff]
  %v775 = vsel %vm415, %v761, 0
  %777 = vmatprep.subr.mxu0 0.0
  %778 = vmatpush1.msra.mxu0 %v762
  %779 = vmatprep.subr.mxu0 0.0
  %780 = vmatpush1.msra.mxu0 %v763
  %781 = vmatprep.subr.mxu0 0.0
  %782 = vmatpush1.msra.mxu0 %v764
  %783 = vmatprep.subr.mxu0 0.0
  %784 = vmatpush1.msra.mxu0 %v765
  %785 = vmatprep.subr.mxu0 0.0
  %786 = vmatpush1.msra.mxu0 %v766
  %787 = vmatprep.subr.mxu0 0.0
  %788 = vmatpush1.msra.mxu0 %v767
  %789 = vmatprep.subr.mxu0 0.0
  %790 = vmatpush1.msra.mxu0 %v768
  %791 = vmatprep.subr.mxu0 0.0
  %792 = vmatpush1.msra.mxu0 %v769
  %793 = vmatprep.subr.mxu0 0.0
  %794 = vmatpush1.msra.mxu0 %v770
  %795 = vmatprep.subr.mxu0 0.0
  %796 = vmatpush1.msra.mxu0 %v771
  %797 = vmatprep.subr.mxu0 0.0
  %798 = vmatpush1.msra.mxu0 %v772
  %799 = vmatprep.subr.mxu0 0.0
  %800 = vmatpush1.msra.mxu0 %v773
  %801 = vmatprep.subr.mxu0 0.0
  %802 = vmatpush1.msra.mxu0 0.0
  %803 = vmatprep.subr.mxu0 0.0
  %804 = vmatpush1.msra.mxu0 0.0
  %805 = vmatprep.subr.mxu0 0.0
  %806 = vmatpush1.msra.mxu0 0.0
  %807 = vmatprep.subr.mxu0 0.0
  %808 = vmatpush1.msra.mxu0 0.0
  %809 = vmatprep.subr.mxu0 0.0
  %810 = vmatpush1.msra.mxu0 0.0
  %811 = vmatprep.subr.mxu0 0.0
  %812 = vmatpush1.msra.mxu0 0.0
  %813 = vmatprep.subr.mxu0 0.0
  %814 = vmatpush1.msra.mxu0 0.0
  %815 = vmatprep.subr.mxu0 0.0
  %816 = vmatpush1.msra.mxu0 0.0
  %817 = vmatprep.subr.mxu0 0.0
  %818 = vmatpush1.msra.mxu0 0.0
  %819 = vmatprep.subr.mxu0 0.0
  %820 = vmatpush1.msra.mxu0 0.0
  %821 = vmatprep.subr.mxu0 0.0
  %822 = vmatpush1.msra.mxu0 0.0
  %823 = vmatprep.subr.mxu0 0.0
  %824 = vmatpush1.msra.mxu0 0.0
  %825 = vmatprep.subr.mxu0 0.0
  %826 = vmatpush1.msra.mxu0 0.0
  %827 = vmatprep.subr.mxu0 0.0
  %828 = vmatpush1.msra.mxu0 0.0
  %829 = vmatprep.subr.mxu0 0.0
  %830 = vmatpush1.msra.mxu0 0.0
  %831 = vmatprep.subr.mxu0 0.0
  %832 = vmatpush1.msra.mxu0 0.0
  %833 = vmatprep.subr.mxu0 0.0
  %834 = vmatpush1.msra.mxu0 0.0
  %835 = vmatprep.subr.mxu0 0.0
  %836 = vmatpush1.msra.mxu0 0.0
  %837 = vmatprep.subr.mxu0 0.0
  %838 = vmatpush1.msra.mxu0 0.0
  %839 = vmatprep.subr.mxu0 0.0
  %840 = vmatpush1.msra.mxu0 0.0
  %841 = vmatprep.mubr.f32.mxu0 0.0
  %842 = vmatmul.mubr.f32.gmra.mrb[0].mxu0 %v775
  %v843 = vpop.f32.mrb[0].mxu0
  %v844 = vadd.f32 0.0, %v843
  %v845 = vpop.f32.mrb[0].mxu0
  %846 = vdwg.mxu0
  %v847 = vmul.f32 %v844, 0.0034722222
  %v848 = vmul.f32 %v847, %v847
  %v850 = vrot.slane %v848, 7
  %v852 = vsub.f32 %v847, %v850
  %v853 = vmax.f32 %v852, 0.0
  %v854 = vadd.f32 %v853, 1e-05
  %v855 = vrsqrt.pop %v854
  %v856 = vld [vmem:[%s6] sm:$0x1]
  %v858 = vlaneseq
  %v859 = vshrl.u32 %v858, 7
  %v860 = vsub.s32 0, %v859
  %v861 = vrot.slane %v856, %v860
  %v863 = vmul.f32 %v855, %v861
  %v864 = vld [vmem:[%s7] sm:$0x1]
  %v866 = vrot.slane %v863, 1
  %v868 = vmul.f32 %v847, %v866
  %v869 = vsub.f32 %v864, %v868
  %v870 = vlaneseq
  %v871 = vshrl.u32 %v870, 7
  %v872 = vsub.s32 1, %v871
  %v873 = vrot.slane %v863, %v872
  %v874 = vmul.f32 %v723, %v873
  %v875 = vmul.f32 %v726, %v873
  %v876 = vmul.f32 %v731, %v873
  %v878 = vlaneseq
  %v879 = vshrl.u32 %v878, 7
  %v880 = vsub.s32 0, %v879
  %v881 = vrot.slane %v869, %v880
  %v883 = vadd.f32 %v874, %v881
  %v884 = vadd.f32 %v875, %v881
  %v885 = vadd.f32 %v876, %v881
  %v886 = vmax.f32 %v883, 0.0
  %v887 = vmax.f32 %v884, 0.0
  %v888 = vmax.f32 %v885, 0.0
  %889 = vst.msk [vmem:[%s9] sm:$0xff] %vm415, %v886
  %890 = vst.msk [vmem:[%s9 + $0x8] sm:$0xff] %vm415, %v887
  %891 = vst.msk [vmem:[%s9 + $0x10] sm:$0xff] %vm415, %v888
  // Predicated region
  $region38: #{unet_block_forward.1} parent=0 // pred_check
    _
  $region39: #{unet_block_forward.1} parent=0 // pred_check_branch
    %893 = sbr.rel (0) target = $region41
  $region40: #{unet_block_forward.1} parent=0 // pred_region
    _
  $region41: #{unet_block_forward.1} parent=0 // pred_fallthru
    _
  // Predicated region
  $region42: #{unet_block_forward.1} parent=0 // pred_check
    _
  $region43: #{unet_block_forward.1} parent=0 // pred_check_branch
    %895 = sbr.rel (0) target = $region45
  $region44: #{unet_block_forward.1} parent=0 // pred_region
    _
  $region45: #{unet_block_forward.1} parent=0 // pred_fallthru
    _

</llo_original>
